<compile_context>
chip_gen: v5e
topology: v5e:2x2
jax: 0.10.0
libtpu: 0.0.40
codegen_flags: <defaults>
</compile_context>

<pallas_src>
import functools

import jax
import jax.numpy as jnp
from jax.experimental import pallas as pl

BN_EPS = 1e-5
LANE = 128  # TPU lane width; fc3 weights are padded to this many output lanes.


def _actor_kernel(x_ref, w1_ref, vec_ref, w2_ref, w3_ref, out_ref):
    """Fused: fc1 -> BN(train) -> relu -> fc2 -> relu -> fc3 -> tanh."""
    # bf16 matmul operands (MXU native); f32 accumulation and elementwise math.
    x = x_ref[...].astype(jnp.bfloat16)

    # fc1 (bias omitted: cancelled exactly by the BN batch-mean subtraction).
    h1 = jnp.dot(x, w1_ref[...], preferred_element_type=jnp.float32)

    # bn1: single-pass batch statistics (biased variance), clamped at zero,
    # folded into one scale/shift FMA.
    m = jnp.mean(h1, axis=0, keepdims=True)
    ms = jnp.mean(h1 * h1, axis=0, keepdims=True)
    var = jnp.maximum(ms - m * m, 0.0)

    vec = vec_ref[...]                      # (4, fc1) f32: [gamma; beta; b2; b3pad]
    gamma = vec[0:1, :]
    beta = vec[1:2, :]
    b2 = vec[2:3, :]
    b3 = vec[3:4, :LANE]

    scale = gamma * jax.lax.rsqrt(var + BN_EPS)      # EUP rsqrt
    shift = beta - m * scale
    a1 = jnp.maximum(h1 * scale + shift, 0.0)

    # fc2 + relu
    h2 = jnp.dot(a1.astype(jnp.bfloat16), w2_ref[...],
                 preferred_element_type=jnp.float32) + b2
    a2 = jnp.maximum(h2, 0.0)

    # fc3 (weights padded to 128 output lanes at init) + tanh; store only the
    # real action lanes (output is ~1 KB, masked vst is irrelevant here).
    h3 = jnp.dot(a2.astype(jnp.bfloat16), w3_ref[...],
                 preferred_element_type=jnp.float32) + b3
    out_ref[...] = jnp.tanh(h3[:, :out_ref.shape[-1]])


@functools.partial(jax.jit, static_argnames=("action_size",))
def actor_forward(state, params, *, action_size):
    """state: [B, state_size*num_agents] f32 -> actions [B, action_size] f32."""
    w1, vec, w2, w3p = params
    B, in_dim = state.shape
    fc1, fc2 = w1.shape[1], w2.shape[1]

    operands = (state, w1, vec, w2, w3p)
    full = lambda shape: pl.BlockSpec(shape, lambda: tuple(0 for _ in shape))

    cost = pl.CostEstimate(
        flops=2 * B * (in_dim * fc1 + fc1 * fc2 + fc2 * LANE),
        transcendentals=B * action_size + fc1,
        bytes_accessed=sum(int(op.size) * op.dtype.itemsize for op in operands)
        + B * action_size * 4,
    )

    return pl.pallas_call(
        _actor_kernel,
        out_shape=jax.ShapeDtypeStruct((B, action_size), jnp.float32),
        grid=(),
        in_specs=[full(op.shape) for op in operands],
        out_specs=full((B, action_size)),
        cost_estimate=cost,
    )(*operands)


def init_actor_params(key, state_size, action_size, num_agents,
                      fc1_units=256, fc2_units=256):
    """Deterministic init mimicking Actor.reset_parameters(); weights in bf16.

    All per-call preprocessing (fc3 lane padding, per-feature-vector stacking)
    is done here, once.
    """
    assert fc1_units == fc2_units, "bias/BN vectors are stacked into one (4, fc1) slab"
    assert action_size <= LANE
    in_dim = state_size * num_agents
    k = jax.random.split(key, 5)

    # NOTE(intentional): PyTorch hidden_init() uses weight.size()[0] == out_features
    # as "fan_in"; reproduced faithfully here.
    lim1 = 1.0 / jnp.sqrt(jnp.float32(fc1_units))
    lim2 = 1.0 / jnp.sqrt(jnp.float32(fc2_units))

    w1 = jax.random.uniform(k[0], (in_dim, fc1_units), jnp.float32, -lim1, lim1)
    w2 = jax.random.uniform(k[1], (fc1_units, fc2_units), jnp.float32, -lim2, lim2)
    w3 = jax.random.uniform(k[2], (fc2_units, action_size), jnp.float32, -0.003, 0.003)

    # fc1 bias is intentionally omitted: train-mode BN subtracts the batch mean,
    # which cancels any fc1 bias exactly.
    g1 = jnp.ones((1, fc1_units), jnp.float32)      # bn gamma
    be1 = jnp.zeros((1, fc1_units), jnp.float32)    # bn beta
    b2 = jax.random.uniform(k[3], (1, fc2_units), jnp.float32,
                            -1.0 / jnp.sqrt(jnp.float32(fc1_units)),
                            1.0 / jnp.sqrt(jnp.float32(fc1_units)))
    b3 = jax.random.uniform(k[4], (1, action_size), jnp.float32,
                            -1.0 / jnp.sqrt(jnp.float32(fc2_units)),
                            1.0 / jnp.sqrt(jnp.float32(fc2_units)))

    w3p = jnp.pad(w3, ((0, 0), (0, LANE - action_size))).astype(jnp.bfloat16)
    b3p = jnp.pad(b3, ((0, 0), (0, fc1_units - action_size)))
    vec = jnp.concatenate([g1, be1, b2, b3p], axis=0)   # (4, fc1) f32

    return (w1.astype(jnp.bfloat16), vec, w2.astype(jnp.bfloat16), w3p)


def _reference_forward(state, params, action_size):
    """Pure-JAX reference mirroring the PyTorch forward (train-mode BN), with
    the same bf16 matmul operands / f32 accumulation as the kernel."""
    w1, vec, w2, w3p = params
    gamma, beta, b2 = vec[0:1], vec[1:2], vec[2:3]
    b3 = vec[3:4, :LANE]
    x = state.astype(jnp.bfloat16)
    h1 = jnp.dot(x, w1, preferred_element_type=jnp.float32)
    m = jnp.mean(h1, axis=0, keepdims=True)
    var = jnp.maximum(jnp.mean(h1 * h1, axis=0, keepdims=True) - m * m, 0.0)
    a1 = jnp.maximum((h1 - m) * jax.lax.rsqrt(var + BN_EPS) * gamma + beta, 0.0)
    h2 = jnp.dot(a1.astype(jnp.bfloat16), w2, preferred_element_type=jnp.float32) + b2
    a2 = jnp.maximum(h2, 0.0)
    h3 = jnp.dot(a2.astype(jnp.bfloat16), w3p, preferred_element_type=jnp.float32) + b3
    return jnp.tanh(h3[:, :action_size])


if __name__ == "__main__":
    key = jax.random.PRNGKey(0)
    kp, kx = jax.random.split(key)

    state_size = 8
    num_agents = 2
    action_size = 4
    batch = 64   # train-mode BN needs B > 1; amortizes weight DMA + launch

    params = init_actor_params(kp, state_size, action_size, num_agents)
    state = jax.random.normal(kx, (batch, state_size * num_agents), jnp.float32)

    actions = actor_forward(state, params, action_size=action_size)
    actions = jax.block_until_ready(actions)

    ref = _reference_forward(state, params, action_size)
    assert actions.shape == (batch, action_size)
    assert bool(jnp.all(jnp.abs(actions) <= 1.0)), "tanh range violated"
    assert jnp.allclose(actions, ref, atol=2e-3, rtol=2e-3), "mismatch vs reference"

    print("KERNEL_OK")
</pallas_src>

<mosaic_0001>
module attributes {stable_mosaic.version = 11 : i64} {
  func.func @_actor_kernel(%arg0: memref<64x16xf32, #tpu.memory_space<vmem>>, %arg1: memref<16x256xbf16, #tpu.memory_space<vmem>>, %arg2: memref<4x256xf32, #tpu.memory_space<vmem>>, %arg3: memref<256x256xbf16, #tpu.memory_space<vmem>>, %arg4: memref<256x128xbf16, #tpu.memory_space<vmem>>, %arg5: memref<64x4xf32, #tpu.memory_space<vmem>>) attributes {dimension_semantics = [], scalar_prefetch = 0 : i64, scratch_operands = 0 : i64, tpu.core_type = #tpu.core_type<tc>} {
    %c0 = arith.constant 0 : index
    %c0_0 = arith.constant 0 : index
    %0 = vector.load %arg0[%c0, %c0_0] : memref<64x16xf32, #tpu.memory_space<vmem>>, vector<64x16xf32>
    %1 = arith.truncf %0 : vector<64x16xf32> to vector<64x16xbf16>
    %c0_1 = arith.constant 0 : index
    %c0_2 = arith.constant 0 : index
    %2 = vector.load %arg1[%c0_1, %c0_2] : memref<16x256xbf16, #tpu.memory_space<vmem>>, vector<16x256xbf16>
    %cst = arith.constant dense<0.000000e+00> : vector<64x256xf32>
    %3 = tpu.matmul %1, %2, %cst {dimension_numbers = #tpu.dot_dimension_numbers<[1], [0], [0], [1], [0, 0, 1, 1], [], []>} : vector<64x16xbf16>, vector<16x256xbf16>, vector<64x256xf32> -> vector<64x256xf32>
    %cst_3 = arith.constant dense<0.000000e+00> : vector<256xf32>
    %4 = vector.multi_reduction <add>, %3, %cst_3 [0] : vector<64x256xf32> to vector<256xf32>
    %5 = vector.shape_cast %4 : vector<256xf32> to vector<1x256xf32>
    %cst_4 = arith.constant 6.400000e+01 : f32
    %6 = vector.broadcast %cst_4 : f32 to vector<1x256xf32>
    %7 = arith.divf %5, %6 : vector<1x256xf32>
    %8 = arith.mulf %3, %3 : vector<64x256xf32>
    %cst_5 = arith.constant dense<0.000000e+00> : vector<256xf32>
    %9 = vector.multi_reduction <add>, %8, %cst_5 [0] : vector<64x256xf32> to vector<256xf32>
    %10 = vector.shape_cast %9 : vector<256xf32> to vector<1x256xf32>
    %cst_6 = arith.constant 6.400000e+01 : f32
    %11 = vector.broadcast %cst_6 : f32 to vector<1x256xf32>
    %12 = arith.divf %10, %11 : vector<1x256xf32>
    %13 = arith.mulf %7, %7 : vector<1x256xf32>
    %14 = arith.subf %12, %13 : vector<1x256xf32>
    %cst_7 = arith.constant 0.000000e+00 : f32
    %15 = vector.broadcast %cst_7 : f32 to vector<1x256xf32>
    %16 = arith.maximumf %14, %15 : vector<1x256xf32>
    %c0_8 = arith.constant 0 : index
    %c0_9 = arith.constant 0 : index
    %17 = vector.load %arg2[%c0_8, %c0_9] : memref<4x256xf32, #tpu.memory_space<vmem>>, vector<4x256xf32>
    %18 = vector.extract_strided_slice %17 {offsets = [0, 0], sizes = [1, 256], strides = [1, 1]} : vector<4x256xf32> to vector<1x256xf32>
    %19 = vector.extract_strided_slice %17 {offsets = [1, 0], sizes = [1, 256], strides = [1, 1]} : vector<4x256xf32> to vector<1x256xf32>
    %20 = vector.extract_strided_slice %17 {offsets = [2, 0], sizes = [1, 256], strides = [1, 1]} : vector<4x256xf32> to vector<1x256xf32>
    %21 = vector.extract_strided_slice %17 {offsets = [3, 0], sizes = [1, 128], strides = [1, 1]} : vector<4x256xf32> to vector<1x128xf32>
    %cst_10 = arith.constant 9.99999974E-6 : f32
    %22 = vector.broadcast %cst_10 : f32 to vector<1x256xf32>
    %23 = arith.addf %16, %22 : vector<1x256xf32>
    %24 = math.rsqrt %23 : vector<1x256xf32>
    %25 = arith.mulf %18, %24 : vector<1x256xf32>
    %26 = arith.mulf %7, %25 : vector<1x256xf32>
    %27 = arith.subf %19, %26 : vector<1x256xf32>
    %28 = vector.broadcast %25 : vector<1x256xf32> to vector<64x256xf32>
    %29 = arith.mulf %3, %28 : vector<64x256xf32>
    %30 = vector.broadcast %27 : vector<1x256xf32> to vector<64x256xf32>
    %31 = arith.addf %29, %30 : vector<64x256xf32>
    %cst_11 = arith.constant 0.000000e+00 : f32
    %32 = vector.broadcast %cst_11 : f32 to vector<64x256xf32>
    %33 = arith.maximumf %31, %32 : vector<64x256xf32>
    %34 = arith.truncf %33 : vector<64x256xf32> to vector<64x256xbf16>
    %c0_12 = arith.constant 0 : index
    %c0_13 = arith.constant 0 : index
    %35 = vector.load %arg3[%c0_12, %c0_13] : memref<256x256xbf16, #tpu.memory_space<vmem>>, vector<256x256xbf16>
    %cst_14 = arith.constant dense<0.000000e+00> : vector<64x256xf32>
    %36 = tpu.matmul %34, %35, %cst_14 {dimension_numbers = #tpu.dot_dimension_numbers<[1], [0], [0], [1], [0, 0, 1, 1], [], []>} : vector<64x256xbf16>, vector<256x256xbf16>, vector<64x256xf32> -> vector<64x256xf32>
    %37 = vector.broadcast %20 : vector<1x256xf32> to vector<64x256xf32>
    %38 = arith.addf %36, %37 : vector<64x256xf32>
    %cst_15 = arith.constant 0.000000e+00 : f32
    %39 = vector.broadcast %cst_15 : f32 to vector<64x256xf32>
    %40 = arith.maximumf %38, %39 : vector<64x256xf32>
    %41 = arith.truncf %40 : vector<64x256xf32> to vector<64x256xbf16>
    %c0_16 = arith.constant 0 : index
    %c0_17 = arith.constant 0 : index
    %42 = vector.load %arg4[%c0_16, %c0_17] : memref<256x128xbf16, #tpu.memory_space<vmem>>, vector<256x128xbf16>
    %cst_18 = arith.constant dense<0.000000e+00> : vector<64x128xf32>
    %43 = tpu.matmul %41, %42, %cst_18 {dimension_numbers = #tpu.dot_dimension_numbers<[1], [0], [0], [1], [0, 0, 1, 1], [], []>} : vector<64x256xbf16>, vector<256x128xbf16>, vector<64x128xf32> -> vector<64x128xf32>
    %44 = vector.broadcast %21 : vector<1x128xf32> to vector<64x128xf32>
    %45 = arith.addf %43, %44 : vector<64x128xf32>
    %46 = vector.extract_strided_slice %45 {offsets = [0, 0], sizes = [64, 4], strides = [1, 1]} : vector<64x128xf32> to vector<64x4xf32>
    %47 = math.tanh %46 : vector<64x4xf32>
    %c0_19 = arith.constant 0 : index
    %c0_20 = arith.constant 0 : index
    %48 = vector.load %arg5[%c0_19, %c0_20] : memref<64x4xf32, #tpu.memory_space<vmem>>, vector<64x4xf32>
    tpu.vector_store %arg5[%c0_19, %c0_20], %47 {strides = array<i32>} : memref<64x4xf32, #tpu.memory_space<vmem>>, vector<64x4xf32>,
    return
  }
}

</mosaic_0001>

<llo_original>
// kernel: actor_forward.1
$region0: #{actor_forward.1}
  #allocation0 [shape = 'u32[]', space=smem, size = 0x4, offset = 0x4, fixed_abs, tag = 'smem constant byte address 0x4 - core index']
  #allocation1 [shape = 'u32[72,128]{1,0:T(1,128)}', space=vmem, size = 0x9000, scoped, tag = 'internal scratch']
  %s0 = inlined_call_operand.vmem [shape: f32[64,16], index: 0, kind: input, shape index: {}]
  %s1 = inlined_call_operand.vmem [shape: bf16[16,256], index: 1, kind: input, shape index: {}]
  %s2 = inlined_call_operand.vmem [shape: f32[4,256], index: 2, kind: input, shape index: {}]
  %s3 = inlined_call_operand.hbm [shape: bf16[256,256], index: 3, kind: input, shape index: {}]
  %s4 = inlined_call_operand.hbm [shape: bf16[256,128], index: 4, kind: input, shape index: {}]
  %s5 = inlined_call_operand.vmem [shape: f32[64,4], index: 5, kind: output, shape index: {}]
  %s6 = sld [smem:[#allocation0]]
  $region38: #{actor_forward.1} parent=0
    _
  %s8 = ssub.s32 1, %s6
  %s9 = scalar_select 0, %s8, %s6
  $region1: #{actor_forward.1} parent=0
    #allocation2 [shape = 'u8[131072]{0}', space=vmem, size = 0x20000, scoped, tag = 'input window, operand 3, single buffered']
    #allocation3 [shape = 's32[1]{0}', space=sflag, size = 0x4, scoped, tag = 'scoped memory for actor_forward.1']
    #allocation4 [shape = 'u8[65536]{0}', space=vmem, size = 0x10000, scoped, tag = 'input window, operand 4, single buffered']
    #allocation5 [shape = 's32[1]{0}', space=sflag, size = 0x4, scoped, tag = 'scoped memory for actor_forward.1']
    %10 = vsyncpa [#allocation3], 0
    %11 = vsyncpa [#allocation5], 0
    // Predicated region
    $region2: #{actor_forward.1} parent=1 // pred_check
      _
    $region3: #{actor_forward.1} parent=1 // pred_check_branch
      %13 = sbr.rel (0) target = $region5
    $region4: #{actor_forward.1} parent=1 // pred_region
      _
    $region5: #{actor_forward.1} parent=1 // pred_fallthru
      _
    // Predicated region
    $region6: #{actor_forward.1} parent=1 // pred_check
      _
    $region7: #{actor_forward.1} parent=1 // pred_check_branch
      %15 = sbr.rel (0) target = $region9
    $region8: #{actor_forward.1} parent=1 // pred_region
      _
    $region9: #{actor_forward.1} parent=1 // pred_fallthru
      _
    // Predicated region
    $region10: #{actor_forward.1} parent=1 // pred_check
      _
    $region11: #{actor_forward.1} parent=1 // pred_check_branch
      %17 = sbr.rel (0) target = $region13
    $region12: #{actor_forward.1} parent=1 // pred_region
      _
    $region13: #{actor_forward.1} parent=1 // pred_fallthru
      _
    // Predicated region
    $region14: #{actor_forward.1} parent=1 // pred_check
      _
    $region15: #{actor_forward.1} parent=1 // pred_check_branch
      %19 = sbr.rel (0) target = $region17
    $region16: #{actor_forward.1} parent=1 // pred_region
      %21 = vsyncadd [#allocation3], 0
      %s22 = sshll.u32 %s3, 4
      %s23 = int_to_ptr.hbm [resolvable:$true] %s22
      %s24 = sshll.u32 [#allocation2], 4
      %s25 = int_to_ptr.vmem [resolvable:$true] %s24
      %30 = dma.hbm_to_vmem [thread:$0]  %s23, 4096, %s25, [#allocation3], 128, 128, 8
    $region17: #{actor_forward.1} parent=1 // pred_fallthru
      _
    // Predicated region
    $region18: #{actor_forward.1} parent=1 // pred_check
      _
    $region19: #{actor_forward.1} parent=1 // pred_check_branch
      %32 = sbr.rel (0) target = $region21
    $region20: #{actor_forward.1} parent=1 // pred_region
      %34 = vsyncadd [#allocation5], 0
      %s35 = sshll.u32 %s4, 4
      %s36 = int_to_ptr.hbm [resolvable:$true] %s35
      %s37 = sshll.u32 [#allocation4], 4
      %s38 = int_to_ptr.vmem [resolvable:$true] %s37
      %43 = dma.hbm_to_vmem [thread:$0]  %s36, 2048, %s38, [#allocation5], 64, 64, 4
    $region21: #{actor_forward.1} parent=1 // pred_fallthru
      _
    // Predicated region
    $region22: #{actor_forward.1} parent=1 // pred_check
      _
    $region23: #{actor_forward.1} parent=1 // pred_check_branch
      %45 = sbr.rel (0) target = $region25
    $region24: #{actor_forward.1} parent=1 // pred_region
      %47 = dma.done [#allocation3], 4096
    $region25: #{actor_forward.1} parent=1 // pred_fallthru
      _
    // Predicated region
    $region26: #{actor_forward.1} parent=1 // pred_check
      _
    $region27: #{actor_forward.1} parent=1 // pred_check_branch
      %49 = sbr.rel (0) target = $region29
    $region28: #{actor_forward.1} parent=1 // pred_region
      %51 = dma.done [#allocation5], 2048
    $region29: #{actor_forward.1} parent=1 // pred_fallthru
      _
    %v53 = vld [vmem:[%s0] sm:$0xff]
    %v54 = vld [vmem:[%s0 + $0x8] sm:$0xff]
    %v55 = vld [vmem:[%s0 + $0x10] sm:$0xff]
    %v56 = vld [vmem:[%s0 + $0x18] sm:$0xff]
    %v57 = vld [vmem:[%s0 + $0x20] sm:$0xff]
    %v58 = vld [vmem:[%s0 + $0x28] sm:$0xff]
    %v59 = vld [vmem:[%s0 + $0x30] sm:$0xff]
    %v60 = vld [vmem:[%s0 + $0x38] sm:$0xff]
    %v61 = vpack.c.bf16 %v54, %v53
    %v62 = vpack.c.bf16 %v56, %v55
    %v63 = vpack.c.bf16 %v58, %v57
    %v64 = vpack.c.bf16 %v60, %v59
    %v65 = vld [vmem:[%s1] sm:$0xff]
    %v66 = vld [vmem:[%s1 + $0x8] sm:$0xff]
    %v69 = vunpack.c.l.b16 %v65
    %v70 = vunpack.c.h.b16 %v65
    %v71 = vunpack.c.l.b16 %v66
    %v72 = vunpack.c.h.b16 %v66
    %v73 = vpack.c.b16 %v71, %v69
    %v74 = vpack.c.b16 %v72, %v70
    %vm77 = vcmask 130048
    %v79 = vsel %vm77, %v61, 0
    %v82 = vsel %vm77, %v62, 0
    %v85 = vsel %vm77, %v63, 0
    %v88 = vsel %vm77, %v64, 0
    %90 = vmatpush.bf16.msra.mxu0 0
    %91 = vmatpush.bf16.msra.mxu0 0
    %92 = vmatpush.bf16.msra.mxu0 0
    %93 = vmatpush.bf16.msra.mxu0 0
    %94 = vmatpush.bf16.msra.mxu0 0
    %95 = vmatpush.bf16.msra.mxu0 0
    %96 = vmatpush.bf16.msra.mxu0 0
    %97 = vmatpush.bf16.msra.mxu0 %v73
    %98 = vmatmul.bf16.gmra.mxu0 %v79
    %v99 = vpop.f32.mrf.mxu0
    %v100 = vadd.f32 0.0, %v99
    %v101 = vpop.f32.mrf.mxu0
    %v102 = vadd.f32 0.0, %v101
    %103 = vmatmul.bf16.gmra.mxu0 %v82
    %v104 = vpop.f32.mrf.mxu0
    %v105 = vadd.f32 0.0, %v104
    %v106 = vpop.f32.mrf.mxu0
    %v107 = vadd.f32 0.0, %v106
    %108 = vmatmul.bf16.gmra.mxu0 %v85
    %v109 = vpop.f32.mrf.mxu0
    %v110 = vadd.f32 0.0, %v109
    %v111 = vpop.f32.mrf.mxu0
    %v112 = vadd.f32 0.0, %v111
    %113 = vmatmul.bf16.gmra.mxu0 %v88
    %v114 = vpop.f32.mrf.mxu0
    %v115 = vadd.f32 0.0, %v114
    %v116 = vpop.f32.mrf.mxu0
    %v117 = vadd.f32 0.0, %v116
    %118 = vdwg.mxu0
    %119 = vmatpush.bf16.msra.mxu0 0
    %120 = vmatpush.bf16.msra.mxu0 0
    %121 = vmatpush.bf16.msra.mxu0 0
    %122 = vmatpush.bf16.msra.mxu0 0
    %123 = vmatpush.bf16.msra.mxu0 0
    %124 = vmatpush.bf16.msra.mxu0 0
    %125 = vmatpush.bf16.msra.mxu0 0
    %126 = vmatpush.bf16.msra.mxu0 %v74
    %127 = vmatmul.bf16.gmra.mxu0 %v79
    %v128 = vpop.f32.mrf.mxu0
    %v129 = vadd.f32 0.0, %v128
    %v130 = vpop.f32.mrf.mxu0
    %v131 = vadd.f32 0.0, %v130
    %132 = vmatmul.bf16.gmra.mxu0 %v82
    %v133 = vpop.f32.mrf.mxu0
    %v134 = vadd.f32 0.0, %v133
    %v135 = vpop.f32.mrf.mxu0
    %v136 = vadd.f32 0.0, %v135
    %137 = vmatmul.bf16.gmra.mxu0 %v85
    %v138 = vpop.f32.mrf.mxu0
    %v139 = vadd.f32 0.0, %v138
    %v140 = vpop.f32.mrf.mxu0
    %v141 = vadd.f32 0.0, %v140
    %142 = vmatmul.bf16.gmra.mxu0 %v88
    %v143 = vpop.f32.mrf.mxu0
    %v144 = vadd.f32 0.0, %v143
    %v145 = vpop.f32.mrf.mxu0
    %v146 = vadd.f32 0.0, %v145
    %147 = vdwg.mxu0
    %v148 = vadd.f32 %v100, %v102
    %v149 = vadd.f32 %v148, %v105
    %v150 = vadd.f32 %v149, %v107
    %v151 = vadd.f32 %v150, %v110
    %v152 = vadd.f32 %v151, %v112
    %v153 = vadd.f32 %v152, %v115
    %v154 = vadd.f32 %v153, %v117
    %v155 = vrot.slane %v154, 4
    %v156 = vadd.f32 %v154, %v155
    %v157 = vrot.slane %v156, 2
    %v158 = vadd.f32 %v156, %v157
    %v159 = vrot.slane %v158, 1
    %v160 = vadd.f32 %v158, %v159
    %v161 = vadd.f32 %v129, %v131
    %v162 = vadd.f32 %v161, %v134
    %v163 = vadd.f32 %v162, %v136
    %v164 = vadd.f32 %v163, %v139
    %v165 = vadd.f32 %v164, %v141
    %v166 = vadd.f32 %v165, %v144
    %v167 = vadd.f32 %v166, %v146
    %v168 = vrot.slane %v167, 4
    %v169 = vadd.f32 %v167, %v168
    %v170 = vrot.slane %v169, 2
    %v171 = vadd.f32 %v169, %v170
    %v172 = vrot.slane %v171, 1
    %v173 = vadd.f32 %v171, %v172
    %v174 = vrcp.pop 64.0
    %v175 = vmul.f32 64.0, %v174
    %v176 = vsub.f32 1.0, %v175
    %v177 = vmul.f32 %v174, %v176
    %v178 = vadd.f32 %v174, %v177
    %vm179 = vweird.f32 %v174
    %v180 = vsel %vm179, %v174, %v178
    %v181 = vmul.f32 %v160, %v180
    %v182 = vmul.f32 %v173, %v180
    %v183 = vmul.f32 %v100, %v100
    %v184 = vmul.f32 %v129, %v129
    %v185 = vmul.f32 %v102, %v102
    %v186 = vmul.f32 %v131, %v131
    %v187 = vmul.f32 %v105, %v105
    %v188 = vmul.f32 %v134, %v134
    %v189 = vmul.f32 %v107, %v107
    %v190 = vmul.f32 %v136, %v136
    %v191 = vmul.f32 %v110, %v110
    %v192 = vmul.f32 %v139, %v139
    %v193 = vmul.f32 %v112, %v112
    %v194 = vmul.f32 %v141, %v141
    %v195 = vmul.f32 %v115, %v115
    %v196 = vmul.f32 %v144, %v144
    %v197 = vmul.f32 %v117, %v117
    %v198 = vmul.f32 %v146, %v146
    %v199 = vadd.f32 %v183, %v185
    %v200 = vadd.f32 %v199, %v187
    %v201 = vadd.f32 %v200, %v189
    %v202 = vadd.f32 %v201, %v191
    %v203 = vadd.f32 %v202, %v193
    %v204 = vadd.f32 %v203, %v195
    %v205 = vadd.f32 %v204, %v197
    %v206 = vrot.slane %v205, 4
    %v207 = vadd.f32 %v205, %v206
    %v208 = vrot.slane %v207, 2
    %v209 = vadd.f32 %v207, %v208
    %v210 = vrot.slane %v209, 1
    %v211 = vadd.f32 %v209, %v210
    %v212 = vadd.f32 %v184, %v186
    %v213 = vadd.f32 %v212, %v188
    %v214 = vadd.f32 %v213, %v190
    %v215 = vadd.f32 %v214, %v192
    %v216 = vadd.f32 %v215, %v194
    %v217 = vadd.f32 %v216, %v196
    %v218 = vadd.f32 %v217, %v198
    %v219 = vrot.slane %v218, 4
    %v220 = vadd.f32 %v218, %v219
    %v221 = vrot.slane %v220, 2
    %v222 = vadd.f32 %v220, %v221
    %v223 = vrot.slane %v222, 1
    %v224 = vadd.f32 %v222, %v223
    %v225 = vmul.f32 %v211, %v180
    %v226 = vmul.f32 %v224, %v180
    %v227 = vmul.f32 %v181, %v181
    %v228 = vmul.f32 %v182, %v182
    %v229 = vsub.f32 %v225, %v227
    %v230 = vsub.f32 %v226, %v228
    %v231 = vmax.f32 %v229, 0.0
    %v232 = vmax.f32 %v230, 0.0
    %v233 = vld [vmem:[%s2] sm:$0xff]
    %v234 = vadd.f32 %v231, 1e-05
    %v235 = vadd.f32 %v232, 1e-05
    %v236 = vrsqrt.pop %v234
    %v237 = vmul.f32 %v236, %v234
    %v238 = vmul.f32 %v237, %v236
    %v239 = vmul.f32 0.5, %v238
    %v240 = vsub.f32 1.5, %v239
    %v241 = vmul.f32 %v236, %v240
    %vm242 = vweird.f32 %v234
    %vm243 = vweird.f32 %v236
    %vm244 = vmor %vm242, %vm243
    %v245 = vsel %vm244, %v236, %v241
    %v246 = vrsqrt.pop %v235
    %v247 = vmul.f32 %v246, %v235
    %v248 = vmul.f32 %v247, %v246
    %v249 = vmul.f32 0.5, %v248
    %v250 = vsub.f32 1.5, %v249
    %v251 = vmul.f32 %v246, %v250
    %vm252 = vweird.f32 %v235
    %vm253 = vweird.f32 %v246
    %vm254 = vmor %vm252, %vm253
    %v255 = vsel %vm254, %v246, %v251
    %v258 = vrot.slane %v255, 4
    %vm259 = vcmask 1043456
    %v260 = vsel %vm259, %v245, %v258
    %v262 = vmul.f32 %v233, %v260
    %v264 = vperm.slane %v262, 0
    %v265 = vperm.slane %v262, 4
    %v268 = vmul.f32 %v181, %v264
    %v269 = vmul.f32 %v182, %v265
    %v272 = vrot.slane %v269, 4
    %v273 = vsel %vm259, %v268, %v272
    %v274 = vrot.slane %v273, 7
    %v276 = vsub.f32 %v233, %v274
    %v277 = vperm.slane %v264, 0
    %v278 = vperm.slane %v265, 0
    %v279 = vmul.f32 %v100, %v277
    %v280 = vmul.f32 %v129, %v278
    %v281 = vmul.f32 %v102, %v277
    %v282 = vmul.f32 %v131, %v278
    %v283 = vmul.f32 %v105, %v277
    %v284 = vmul.f32 %v134, %v278
    %v285 = vmul.f32 %v107, %v277
    %v286 = vmul.f32 %v136, %v278
    %v287 = vmul.f32 %v110, %v277
    %v288 = vmul.f32 %v139, %v278
    %v289 = vmul.f32 %v112, %v277
    %v290 = vmul.f32 %v141, %v278
    %v291 = vmul.f32 %v115, %v277
    %v292 = vmul.f32 %v144, %v278
    %v293 = vmul.f32 %v117, %v277
    %v294 = vmul.f32 %v146, %v278
    %v296 = vperm.slane %v276, 1
    %v297 = vperm.slane %v276, 5
    %v300 = vperm.slane %v296, 1
    %v301 = vperm.slane %v297, 1
    %v302 = vadd.f32 %v279, %v300
    %v303 = vadd.f32 %v280, %v301
    %v304 = vadd.f32 %v281, %v300
    %v305 = vadd.f32 %v282, %v301
    %v306 = vadd.f32 %v283, %v300
    %v307 = vadd.f32 %v284, %v301
    %v308 = vadd.f32 %v285, %v300
    %v309 = vadd.f32 %v286, %v301
    %v310 = vadd.f32 %v287, %v300
    %v311 = vadd.f32 %v288, %v301
    %v312 = vadd.f32 %v289, %v300
    %v313 = vadd.f32 %v290, %v301
    %v314 = vadd.f32 %v291, %v300
    %v315 = vadd.f32 %v292, %v301
    %v316 = vadd.f32 %v293, %v300
    %v317 = vadd.f32 %v294, %v301
    %v318 = vmax.f32 %v302, 0.0
    %v319 = vmax.f32 %v303, 0.0
    %v320 = vmax.f32 %v304, 0.0
    %v321 = vmax.f32 %v305, 0.0
    %v322 = vmax.f32 %v306, 0.0
    %v323 = vmax.f32 %v307, 0.0
    %v324 = vmax.f32 %v308, 0.0
    %v325 = vmax.f32 %v309, 0.0
    %v326 = vmax.f32 %v310, 0.0
    %v327 = vmax.f32 %v311, 0.0
    %v328 = vmax.f32 %v312, 0.0
    %v329 = vmax.f32 %v313, 0.0
    %v330 = vmax.f32 %v314, 0.0
    %v331 = vmax.f32 %v315, 0.0
    %v332 = vmax.f32 %v316, 0.0
    %v333 = vmax.f32 %v317, 0.0
    %v334 = vpack.c.bf16 %v320, %v318
    %v335 = vpack.c.bf16 %v321, %v319
    %v336 = vpack.c.bf16 %v324, %v322
    %v337 = vpack.c.bf16 %v325, %v323
    %v338 = vpack.c.bf16 %v328, %v326
    %v339 = vpack.c.bf16 %v329, %v327
    %v340 = vpack.c.bf16 %v332, %v330
    %v341 = vpack.c.bf16 %v333, %v331
    %v342 = vld [vmem:[#allocation2] sm:$0xff]
    %v343 = vld [vmem:[#allocation2 + $0x8] sm:$0xff]
    %v344 = vld [vmem:[#allocation2 + $0x10] sm:$0xff]
    %v345 = vld [vmem:[#allocation2 + $0x18] sm:$0xff]
    %v346 = vld [vmem:[#allocation2 + $0x20] sm:$0xff]
    %v347 = vld [vmem:[#allocation2 + $0x28] sm:$0xff]
    %v348 = vld [vmem:[#allocation2 + $0x30] sm:$0xff]
    %v349 = vld [vmem:[#allocation2 + $0x38] sm:$0xff]
    %v350 = vld [vmem:[#allocation2 + $0x40] sm:$0xff]
    %v351 = vld [vmem:[#allocation2 + $0x48] sm:$0xff]
    %v352 = vld [vmem:[#allocation2 + $0x50] sm:$0xff]
    %v353 = vld [vmem:[#allocation2 + $0x58] sm:$0xff]
    %v354 = vld [vmem:[#allocation2 + $0x60] sm:$0xff]
    %v355 = vld [vmem:[#allocation2 + $0x68] sm:$0xff]
    %v356 = vld [vmem:[#allocation2 + $0x70] sm:$0xff]
    %v357 = vld [vmem:[#allocation2 + $0x78] sm:$0xff]
    %v358 = vld [vmem:[#allocation2 + $0x80] sm:$0xff]
    %v359 = vld [vmem:[#allocation2 + $0x88] sm:$0xff]
    %v360 = vld [vmem:[#allocation2 + $0x90] sm:$0xff]
    %v361 = vld [vmem:[#allocation2 + $0x98] sm:$0xff]
    %v362 = vld [vmem:[#allocation2 + $0xa0] sm:$0xff]
    %v363 = vld [vmem:[#allocation2 + $0xa8] sm:$0xff]
    %v364 = vld [vmem:[#allocation2 + $0xb0] sm:$0xff]
    %v365 = vld [vmem:[#allocation2 + $0xb8] sm:$0xff]
    %v366 = vld [vmem:[#allocation2 + $0xc0] sm:$0xff]
    %v367 = vld [vmem:[#allocation2 + $0xc8] sm:$0xff]
    %v368 = vld [vmem:[#allocation2 + $0xd0] sm:$0xff]
    %v369 = vld [vmem:[#allocation2 + $0xd8] sm:$0xff]
    %v370 = vld [vmem:[#allocation2 + $0xe0] sm:$0xff]
    %v371 = vld [vmem:[#allocation2 + $0xe8] sm:$0xff]
    %v372 = vld [vmem:[#allocation2 + $0xf0] sm:$0xff]
    %v373 = vld [vmem:[#allocation2 + $0xf8] sm:$0xff]
    %v375 = vperm.slane %v233, 2
    %v376 = vperm.slane %v233, 6
    %v379 = vperm.slane %v375, 2
    %v380 = vperm.slane %v376, 2
    %v413 = vunpack.c.l.b16 %v342
    %v414 = vunpack.c.h.b16 %v342
    %v415 = vunpack.c.l.b16 %v343
    %v416 = vunpack.c.h.b16 %v343
    %v417 = vunpack.c.l.b16 %v344
    %v418 = vunpack.c.h.b16 %v344
    %v419 = vunpack.c.l.b16 %v345
    %v420 = vunpack.c.h.b16 %v345
    %v421 = vunpack.c.l.b16 %v346
    %v422 = vunpack.c.h.b16 %v346
    %v423 = vunpack.c.l.b16 %v347
    %v424 = vunpack.c.h.b16 %v347
    %v425 = vunpack.c.l.b16 %v348
    %v426 = vunpack.c.h.b16 %v348
    %v427 = vunpack.c.l.b16 %v349
    %v428 = vunpack.c.h.b16 %v349
    %v429 = vunpack.c.l.b16 %v350
    %v430 = vunpack.c.h.b16 %v350
    %v431 = vunpack.c.l.b16 %v351
    %v432 = vunpack.c.h.b16 %v351
    %v433 = vunpack.c.l.b16 %v352
    %v434 = vunpack.c.h.b16 %v352
    %v435 = vunpack.c.l.b16 %v353
    %v436 = vunpack.c.h.b16 %v353
    %v437 = vunpack.c.l.b16 %v354
    %v438 = vunpack.c.h.b16 %v354
    %v439 = vunpack.c.l.b16 %v355
    %v440 = vunpack.c.h.b16 %v355
    %v441 = vunpack.c.l.b16 %v356
    %v442 = vunpack.c.h.b16 %v356
    %v443 = vunpack.c.l.b16 %v357
    %v444 = vunpack.c.h.b16 %v357
    %v445 = vunpack.c.l.b16 %v358
    %v446 = vunpack.c.h.b16 %v358
    %v447 = vunpack.c.l.b16 %v359
    %v448 = vunpack.c.h.b16 %v359
    %v449 = vunpack.c.l.b16 %v360
    %v450 = vunpack.c.h.b16 %v360
    %v451 = vunpack.c.l.b16 %v361
    %v452 = vunpack.c.h.b16 %v361
    %v453 = vunpack.c.l.b16 %v362
    %v454 = vunpack.c.h.b16 %v362
    %v455 = vunpack.c.l.b16 %v363
    %v456 = vunpack.c.h.b16 %v363
    %v457 = vunpack.c.l.b16 %v364
    %v458 = vunpack.c.h.b16 %v364
    %v459 = vunpack.c.l.b16 %v365
    %v460 = vunpack.c.h.b16 %v365
    %v461 = vunpack.c.l.b16 %v366
    %v462 = vunpack.c.h.b16 %v366
    %v463 = vunpack.c.l.b16 %v367
    %v464 = vunpack.c.h.b16 %v367
    %v465 = vunpack.c.l.b16 %v368
    %v466 = vunpack.c.h.b16 %v368
    %v467 = vunpack.c.l.b16 %v369
    %v468 = vunpack.c.h.b16 %v369
    %v469 = vunpack.c.l.b16 %v370
    %v470 = vunpack.c.h.b16 %v370
    %v471 = vunpack.c.l.b16 %v371
    %v472 = vunpack.c.h.b16 %v371
    %v473 = vunpack.c.l.b16 %v372
    %v474 = vunpack.c.h.b16 %v372
    %v475 = vunpack.c.l.b16 %v373
    %v476 = vunpack.c.h.b16 %v373
    %v477 = vpack.c.b16 %v415, %v413
    %v478 = vpack.c.b16 %v416, %v414
    %v479 = vpack.c.b16 %v419, %v417
    %v480 = vpack.c.b16 %v420, %v418
    %v481 = vpack.c.b16 %v423, %v421
    %v482 = vpack.c.b16 %v424, %v422
    %v483 = vpack.c.b16 %v427, %v425
    %v484 = vpack.c.b16 %v428, %v426
    %v485 = vpack.c.b16 %v431, %v429
    %v486 = vpack.c.b16 %v432, %v430
    %v487 = vpack.c.b16 %v435, %v433
    %v488 = vpack.c.b16 %v436, %v434
    %v489 = vpack.c.b16 %v439, %v437
    %v490 = vpack.c.b16 %v440, %v438
    %v491 = vpack.c.b16 %v443, %v441
    %v492 = vpack.c.b16 %v444, %v442
    %v493 = vpack.c.b16 %v447, %v445
    %v494 = vpack.c.b16 %v448, %v446
    %v495 = vpack.c.b16 %v451, %v449
    %v496 = vpack.c.b16 %v452, %v450
    %v497 = vpack.c.b16 %v455, %v453
    %v498 = vpack.c.b16 %v456, %v454
    %v499 = vpack.c.b16 %v459, %v457
    %v500 = vpack.c.b16 %v460, %v458
    %v501 = vpack.c.b16 %v463, %v461
    %v502 = vpack.c.b16 %v464, %v462
    %v503 = vpack.c.b16 %v467, %v465
    %v504 = vpack.c.b16 %v468, %v466
    %v505 = vpack.c.b16 %v471, %v469
    %v506 = vpack.c.b16 %v472, %v470
    %v507 = vpack.c.b16 %v475, %v473
    %v508 = vpack.c.b16 %v476, %v474
    %541 = vmatpush.bf16.msra.mxu0 %v491
    %542 = vmatpush.bf16.msra.mxu0 %v489
    %543 = vmatpush.bf16.msra.mxu0 %v487
    %544 = vmatpush.bf16.msra.mxu0 %v485
    %545 = vmatpush.bf16.msra.mxu0 %v483
    %546 = vmatpush.bf16.msra.mxu0 %v481
    %547 = vmatpush.bf16.msra.mxu0 %v479
    %548 = vmatpush.bf16.msra.mxu0 %v477
    %549 = vmatmul.bf16.gmra.mxu0 %v334
    %v550 = vpop.f32.mrf.mxu0
    %v551 = vadd.f32 %v379, %v550
    %v552 = vpop.f32.mrf.mxu0
    %v553 = vadd.f32 %v379, %v552
    %554 = vmatmul.bf16.gmra.mxu0 %v336
    %v555 = vpop.f32.mrf.mxu0
    %v556 = vadd.f32 %v379, %v555
    %v557 = vpop.f32.mrf.mxu0
    %v558 = vadd.f32 %v379, %v557
    %559 = vmatmul.bf16.gmra.mxu0 %v338
    %v560 = vpop.f32.mrf.mxu0
    %v561 = vadd.f32 %v379, %v560
    %v562 = vpop.f32.mrf.mxu0
    %v563 = vadd.f32 %v379, %v562
    %564 = vmatmul.bf16.gmra.mxu0 %v340
    %v565 = vpop.f32.mrf.mxu0
    %v566 = vadd.f32 %v379, %v565
    %v567 = vpop.f32.mrf.mxu0
    %v568 = vadd.f32 %v379, %v567
    %569 = vdwg.mxu0
    %570 = vmatpush.bf16.msra.mxu0 %v507
    %571 = vmatpush.bf16.msra.mxu0 %v505
    %572 = vmatpush.bf16.msra.mxu0 %v503
    %573 = vmatpush.bf16.msra.mxu0 %v501
    %574 = vmatpush.bf16.msra.mxu0 %v499
    %575 = vmatpush.bf16.msra.mxu0 %v497
    %576 = vmatpush.bf16.msra.mxu0 %v495
    %577 = vmatpush.bf16.msra.mxu0 %v493
    %578 = vmatmul.bf16.gmra.mxu0 %v335
    %v579 = vpop.f32.mrf.mxu0
    %v580 = vadd.f32 %v551, %v579
    %v581 = vpop.f32.mrf.mxu0
    %v582 = vadd.f32 %v553, %v581
    %583 = vmatmul.bf16.gmra.mxu0 %v337
    %v584 = vpop.f32.mrf.mxu0
    %v585 = vadd.f32 %v556, %v584
    %v586 = vpop.f32.mrf.mxu0
    %v587 = vadd.f32 %v558, %v586
    %588 = vmatmul.bf16.gmra.mxu0 %v339
    %v589 = vpop.f32.mrf.mxu0
    %v590 = vadd.f32 %v561, %v589
    %v591 = vpop.f32.mrf.mxu0
    %v592 = vadd.f32 %v563, %v591
    %593 = vmatmul.bf16.gmra.mxu0 %v341
    %v594 = vpop.f32.mrf.mxu0
    %v595 = vadd.f32 %v566, %v594
    %v596 = vpop.f32.mrf.mxu0
    %v597 = vadd.f32 %v568, %v596
    %598 = vdwg.mxu0
    %599 = vmatpush.bf16.msra.mxu0 %v492
    %600 = vmatpush.bf16.msra.mxu0 %v490
    %601 = vmatpush.bf16.msra.mxu0 %v488
    %602 = vmatpush.bf16.msra.mxu0 %v486
    %603 = vmatpush.bf16.msra.mxu0 %v484
    %604 = vmatpush.bf16.msra.mxu0 %v482
    %605 = vmatpush.bf16.msra.mxu0 %v480
    %606 = vmatpush.bf16.msra.mxu0 %v478
    %607 = vmatmul.bf16.gmra.mxu0 %v334
    %v608 = vpop.f32.mrf.mxu0
    %v609 = vadd.f32 %v380, %v608
    %v610 = vpop.f32.mrf.mxu0
    %v611 = vadd.f32 %v380, %v610
    %612 = vmatmul.bf16.gmra.mxu0 %v336
    %v613 = vpop.f32.mrf.mxu0
    %v614 = vadd.f32 %v380, %v613
    %v615 = vpop.f32.mrf.mxu0
    %v616 = vadd.f32 %v380, %v615
    %617 = vmatmul.bf16.gmra.mxu0 %v338
    %v618 = vpop.f32.mrf.mxu0
    %v619 = vadd.f32 %v380, %v618
    %v620 = vpop.f32.mrf.mxu0
    %v621 = vadd.f32 %v380, %v620
    %622 = vmatmul.bf16.gmra.mxu0 %v340
    %v623 = vpop.f32.mrf.mxu0
    %v624 = vadd.f32 %v380, %v623
    %v625 = vpop.f32.mrf.mxu0
    %v626 = vadd.f32 %v380, %v625
    %627 = vdwg.mxu0
    %628 = vmatpush.bf16.msra.mxu0 %v508
    %629 = vmatpush.bf16.msra.mxu0 %v506
    %630 = vmatpush.bf16.msra.mxu0 %v504
    %631 = vmatpush.bf16.msra.mxu0 %v502
    %632 = vmatpush.bf16.msra.mxu0 %v500
    %633 = vmatpush.bf16.msra.mxu0 %v498
    %634 = vmatpush.bf16.msra.mxu0 %v496
    %635 = vmatpush.bf16.msra.mxu0 %v494
    %636 = vmatmul.bf16.gmra.mxu0 %v335
    %v637 = vpop.f32.mrf.mxu0
    %v638 = vadd.f32 %v609, %v637
    %v639 = vpop.f32.mrf.mxu0
    %v640 = vadd.f32 %v611, %v639
    %641 = vmatmul.bf16.gmra.mxu0 %v337
    %v642 = vpop.f32.mrf.mxu0
    %v643 = vadd.f32 %v614, %v642
    %v644 = vpop.f32.mrf.mxu0
    %v645 = vadd.f32 %v616, %v644
    %646 = vmatmul.bf16.gmra.mxu0 %v339
    %v647 = vpop.f32.mrf.mxu0
    %v648 = vadd.f32 %v619, %v647
    %v649 = vpop.f32.mrf.mxu0
    %v650 = vadd.f32 %v621, %v649
    %651 = vmatmul.bf16.gmra.mxu0 %v341
    %v652 = vpop.f32.mrf.mxu0
    %v653 = vadd.f32 %v624, %v652
    %v654 = vpop.f32.mrf.mxu0
    %v655 = vadd.f32 %v626, %v654
    %656 = vdwg.mxu0
    %v657 = vmax.f32 %v580, 0.0
    %v658 = vmax.f32 %v638, 0.0
    %v659 = vmax.f32 %v582, 0.0
    %v660 = vmax.f32 %v640, 0.0
    %v661 = vmax.f32 %v585, 0.0
    %v662 = vmax.f32 %v643, 0.0
    %v663 = vmax.f32 %v587, 0.0
    %v664 = vmax.f32 %v645, 0.0
    %v665 = vmax.f32 %v590, 0.0
    %v666 = vmax.f32 %v648, 0.0
    %v667 = vmax.f32 %v592, 0.0
    %v668 = vmax.f32 %v650, 0.0
    %v669 = vmax.f32 %v595, 0.0
    %v670 = vmax.f32 %v653, 0.0
    %v671 = vmax.f32 %v597, 0.0
    %v672 = vmax.f32 %v655, 0.0
    %v673 = vpack.c.bf16 %v659, %v657
    %v674 = vpack.c.bf16 %v660, %v658
    %v675 = vpack.c.bf16 %v663, %v661
    %v676 = vpack.c.bf16 %v664, %v662
    %v677 = vpack.c.bf16 %v667, %v665
    %v678 = vpack.c.bf16 %v668, %v666
    %v679 = vpack.c.bf16 %v671, %v669
    %v680 = vpack.c.bf16 %v672, %v670
    %v681 = vld [vmem:[#allocation4] sm:$0xf]
    %v682 = vld [vmem:[#allocation4 + $0x4] sm:$0xf]
    %v683 = vld [vmem:[#allocation4 + $0x8] sm:$0xf]
    %v684 = vld [vmem:[#allocation4 + $0xc] sm:$0xf]
    %v685 = vld [vmem:[#allocation4 + $0x10] sm:$0xf]
    %v686 = vld [vmem:[#allocation4 + $0x14] sm:$0xf]
    %v687 = vld [vmem:[#allocation4 + $0x18] sm:$0xf]
    %v688 = vld [vmem:[#allocation4 + $0x1c] sm:$0xf]
    %v689 = vld [vmem:[#allocation4 + $0x20] sm:$0xf]
    %v690 = vld [vmem:[#allocation4 + $0x24] sm:$0xf]
    %v691 = vld [vmem:[#allocation4 + $0x28] sm:$0xf]
    %v692 = vld [vmem:[#allocation4 + $0x2c] sm:$0xf]
    %v693 = vld [vmem:[#allocation4 + $0x30] sm:$0xf]
    %v694 = vld [vmem:[#allocation4 + $0x34] sm:$0xf]
    %v695 = vld [vmem:[#allocation4 + $0x38] sm:$0xf]
    %v696 = vld [vmem:[#allocation4 + $0x3c] sm:$0xf]
    %v697 = vld [vmem:[#allocation4 + $0x40] sm:$0xf]
    %v698 = vld [vmem:[#allocation4 + $0x44] sm:$0xf]
    %v699 = vld [vmem:[#allocation4 + $0x48] sm:$0xf]
    %v700 = vld [vmem:[#allocation4 + $0x4c] sm:$0xf]
    %v701 = vld [vmem:[#allocation4 + $0x50] sm:$0xf]
    %v702 = vld [vmem:[#allocation4 + $0x54] sm:$0xf]
    %v703 = vld [vmem:[#allocation4 + $0x58] sm:$0xf]
    %v704 = vld [vmem:[#allocation4 + $0x5c] sm:$0xf]
    %v705 = vld [vmem:[#allocation4 + $0x60] sm:$0xf]
    %v706 = vld [vmem:[#allocation4 + $0x64] sm:$0xf]
    %v707 = vld [vmem:[#allocation4 + $0x68] sm:$0xf]
    %v708 = vld [vmem:[#allocation4 + $0x6c] sm:$0xf]
    %v709 = vld [vmem:[#allocation4 + $0x70] sm:$0xf]
    %v710 = vld [vmem:[#allocation4 + $0x74] sm:$0xf]
    %v711 = vld [vmem:[#allocation4 + $0x78] sm:$0xf]
    %v712 = vld [vmem:[#allocation4 + $0x7c] sm:$0xf]
    %v713 = vperm.slane %v233, 3
    %v746 = vunpack.c.l.b16 %v681
    %v747 = vunpack.c.l.b16 %v682
    %v748 = vunpack.c.l.b16 %v683
    %v749 = vunpack.c.l.b16 %v684
    %v750 = vunpack.c.l.b16 %v685
    %v751 = vunpack.c.l.b16 %v686
    %v752 = vunpack.c.l.b16 %v687
    %v753 = vunpack.c.l.b16 %v688
    %v754 = vunpack.c.l.b16 %v689
    %v755 = vunpack.c.l.b16 %v690
    %v756 = vunpack.c.l.b16 %v691
    %v757 = vunpack.c.l.b16 %v692
    %v758 = vunpack.c.l.b16 %v693
    %v759 = vunpack.c.l.b16 %v694
    %v760 = vunpack.c.l.b16 %v695
    %v761 = vunpack.c.l.b16 %v696
    %v762 = vunpack.c.l.b16 %v697
    %v763 = vunpack.c.l.b16 %v698
    %v764 = vunpack.c.l.b16 %v699
    %v765 = vunpack.c.l.b16 %v700
    %v766 = vunpack.c.l.b16 %v701
    %v767 = vunpack.c.l.b16 %v702
    %v768 = vunpack.c.l.b16 %v703
    %v769 = vunpack.c.l.b16 %v704
    %v770 = vunpack.c.l.b16 %v705
    %v771 = vunpack.c.l.b16 %v706
    %v772 = vunpack.c.l.b16 %v707
    %v773 = vunpack.c.l.b16 %v708
    %v774 = vunpack.c.l.b16 %v709
    %v775 = vunpack.c.l.b16 %v710
    %v776 = vunpack.c.l.b16 %v711
    %v777 = vunpack.c.l.b16 %v712
    %v778 = vpack.c.b16 %v747, %v746
    %v779 = vpack.c.b16 %v749, %v748
    %v780 = vpack.c.b16 %v751, %v750
    %v781 = vpack.c.b16 %v753, %v752
    %v782 = vpack.c.b16 %v755, %v754
    %v783 = vpack.c.b16 %v757, %v756
    %v784 = vpack.c.b16 %v759, %v758
    %v785 = vpack.c.b16 %v761, %v760
    %v786 = vpack.c.b16 %v763, %v762
    %v787 = vpack.c.b16 %v765, %v764
    %v788 = vpack.c.b16 %v767, %v766
    %v789 = vpack.c.b16 %v769, %v768
    %v790 = vpack.c.b16 %v771, %v770
    %v791 = vpack.c.b16 %v773, %v772
    %v792 = vpack.c.b16 %v775, %v774
    %v793 = vpack.c.b16 %v777, %v776
    %810 = vmatpush.bf16.msra.mxu0 %v785
    %811 = vmatpush.bf16.msra.mxu0 %v784
    %812 = vmatpush.bf16.msra.mxu0 %v783
    %813 = vmatpush.bf16.msra.mxu0 %v782
    %814 = vmatpush.bf16.msra.mxu0 %v781
    %815 = vmatpush.bf16.msra.mxu0 %v780
    %816 = vmatpush.bf16.msra.mxu0 %v779
    %817 = vmatpush.bf16.msra.mxu0 %v778
    %818 = vmatmul.bf16.gmra.mxu0 %v673
    %v819 = vpop.f32.mrf.mxu0
    %v820 = vadd.f32 %v713, %v819
    %v821 = vpop.f32.mrf.mxu0
    %v822 = vadd.f32 %v713, %v821
    %823 = vmatmul.bf16.gmra.mxu0 %v675
    %v824 = vpop.f32.mrf.mxu0
    %v825 = vadd.f32 %v713, %v824
    %v826 = vpop.f32.mrf.mxu0
    %v827 = vadd.f32 %v713, %v826
    %828 = vmatmul.bf16.gmra.mxu0 %v677
    %v829 = vpop.f32.mrf.mxu0
    %v830 = vadd.f32 %v713, %v829
    %v831 = vpop.f32.mrf.mxu0
    %v832 = vadd.f32 %v713, %v831
    %833 = vmatmul.bf16.gmra.mxu0 %v679
    %v834 = vpop.f32.mrf.mxu0
    %v835 = vadd.f32 %v713, %v834
    %v836 = vpop.f32.mrf.mxu0
    %v837 = vadd.f32 %v713, %v836
    %838 = vdwg.mxu0
    %839 = vmatpush.bf16.msra.mxu0 %v793
    %840 = vmatpush.bf16.msra.mxu0 %v792
    %841 = vmatpush.bf16.msra.mxu0 %v791
    %842 = vmatpush.bf16.msra.mxu0 %v790
    %843 = vmatpush.bf16.msra.mxu0 %v789
    %844 = vmatpush.bf16.msra.mxu0 %v788
    %845 = vmatpush.bf16.msra.mxu0 %v787
    %846 = vmatpush.bf16.msra.mxu0 %v786
    %847 = vmatmul.bf16.gmra.mxu0 %v674
    %v848 = vpop.f32.mrf.mxu0
    %v849 = vadd.f32 %v820, %v848
    %v850 = vpop.f32.mrf.mxu0
    %v851 = vadd.f32 %v822, %v850
    %852 = vmatmul.bf16.gmra.mxu0 %v676
    %v853 = vpop.f32.mrf.mxu0
    %v854 = vadd.f32 %v825, %v853
    %v855 = vpop.f32.mrf.mxu0
    %v856 = vadd.f32 %v827, %v855
    %857 = vmatmul.bf16.gmra.mxu0 %v678
    %v858 = vpop.f32.mrf.mxu0
    %v859 = vadd.f32 %v830, %v858
    %v860 = vpop.f32.mrf.mxu0
    %v861 = vadd.f32 %v832, %v860
    %862 = vmatmul.bf16.gmra.mxu0 %v680
    %v863 = vpop.f32.mrf.mxu0
    %v864 = vadd.f32 %v835, %v863
    %v865 = vpop.f32.mrf.mxu0
    %v866 = vadd.f32 %v837, %v865
    %867 = vdwg.mxu0
    %v868 = vtanh.pop %v849
    %v869 = vtanh.pop %v851
    %v870 = vtanh.pop %v854
    %v871 = vtanh.pop %v856
    %v872 = vtanh.pop %v859
    %v873 = vtanh.pop %v861
    %v874 = vtanh.pop %v864
    %v875 = vtanh.pop %v866
    %vm876 = vcmask 31744
    %877 = vst.msk [vmem:[%s5] sm:$0xff] %vm876, %v868
    %878 = vst.msk [vmem:[%s5 + $0x8] sm:$0xff] %vm876, %v869
    %879 = vst.msk [vmem:[%s5 + $0x10] sm:$0xff] %vm876, %v870
    %880 = vst.msk [vmem:[%s5 + $0x18] sm:$0xff] %vm876, %v871
    %881 = vst.msk [vmem:[%s5 + $0x20] sm:$0xff] %vm876, %v872
    %882 = vst.msk [vmem:[%s5 + $0x28] sm:$0xff] %vm876, %v873
    %883 = vst.msk [vmem:[%s5 + $0x30] sm:$0xff] %vm876, %v874
    %884 = vst.msk [vmem:[%s5 + $0x38] sm:$0xff] %vm876, %v875
    // Predicated region
    $region30: #{actor_forward.1} parent=1 // pred_check
      _
    $region31: #{actor_forward.1} parent=1 // pred_check_branch
      %886 = sbr.rel (0) target = $region33
    $region32: #{actor_forward.1} parent=1 // pred_region
      _
    $region33: #{actor_forward.1} parent=1 // pred_fallthru
      _
    // Predicated region
    $region34: #{actor_forward.1} parent=1 // pred_check
      _
    $region35: #{actor_forward.1} parent=1 // pred_check_branch
      %888 = sbr.rel (0) target = $region37
    $region36: #{actor_forward.1} parent=1 // pred_region
      _
    $region37: #{actor_forward.1} parent=1 // pred_fallthru
      _
    %889 = vsyncpa [#allocation3], 1
    %890 = vsyncpa [#allocation5], 1

</llo_original>
